<compile_context>
chip_gen: v5e
topology: v5e:2x2
jax: 0.10.0
libtpu: 0.0.40
codegen_flags: <defaults>
</compile_context>

<pallas_src>
import math
from functools import partial

import jax
import jax.numpy as jnp
from jax.experimental import pallas as pl
from jax.experimental.pallas import tpu as pltpu

EPS = 1e-5          # BatchNorm2d eps
NEG_SLOPE = 0.2     # LeakyReLU(0.2)


# ----------------------------------------------------------------------------
# Kernels.  Grid = (pass, phase, sample, spatial_tile), all "arbitrary"
# (sequential) because BN statistics are carried in scratch across the grid.
# ----------------------------------------------------------------------------
def _fused_kernel_resident(w_ref, p_ref, g_ref, b_ref, o_ref,
                           sum_ref, ssq_ref, y_ref, *, inv_m, n_batch, n_tiles):
    """Pass 0: y = W @ P, stash y in VMEM, accumulate per-channel sum / sumsq.
    Pass 1: reload resident y, normalize with batch stats, per-sample affine,
    LeakyReLU, write lane-dense output tile.  No P re-read, no second matmul."""
    pass_id = pl.program_id(0)
    ph = pl.program_id(1)
    n = pl.program_id(2)
    t = pl.program_id(3)
    first = (ph == 0) & (n == 0) & (t == 0)
    slot = (ph * n_batch + n) * n_tiles + t      # flat tile id into resident scratch

    @pl.when(pass_id == 0)
    def _pass0():
        @pl.when(first)
        def _init():
            sum_ref[...] = jnp.zeros_like(sum_ref)
            ssq_ref[...] = jnp.zeros_like(ssq_ref)

        # MXU: (Cout, K) bf16 @ (K, St) bf16 -> (Cout, St) f32, St lane-dense.
        y = jnp.dot(w_ref[...], p_ref[...], preferred_element_type=jnp.float32)
        y_ref[slot] = y
        # NOTE: single-pass E[y^2] - mean^2 in f32; for very large N*Ho*Wo a centered
        # second pass over the resident y could be added for extra robustness.
        sum_ref[...] += jnp.sum(y, axis=1, keepdims=True)
        ssq_ref[...] += jnp.sum(y * y, axis=1, keepdims=True)

    @pl.when(pass_id == 1)
    def _pass1():
        @pl.when(first)
        def _finalize():
            mean = sum_ref[...] * inv_m
            var = ssq_ref[...] * inv_m - mean * mean
            sum_ref[...] = mean                          # reuse scratch: mean
            ssq_ref[...] = jax.lax.rsqrt(var + EPS)      # reuse scratch: inv-std

        y = y_ref[slot]
        a = g_ref[...] * ssq_ref[...]                    # gamma * inv_std   (Cout,1)
        d = b_ref[...] - a * sum_ref[...]                # beta  - a * mean  (Cout,1)
        z = a * y + d
        # LeakyReLU(0.2) as a single max (valid for 0 < slope < 1).
        o_ref[...] = jnp.maximum(z, NEG_SLOPE * z)       # f32 out; cast to bf16 here
        #                                                # if the consumer accepts it.


def _fused_kernel_recompute(w_ref, p_ref, g_ref, b_ref, o_ref,
                            sum_ref, ssq_ref, *, inv_m):
    """Fallback when the full activation does not fit VMEM: recompute the (cheap,
    small-K) matmul in pass 1 and re-stream P."""
    pass_id = pl.program_id(0)
    first = ((pl.program_id(1) == 0) & (pl.program_id(2) == 0) &
             (pl.program_id(3) == 0))

    y = jnp.dot(w_ref[...], p_ref[...], preferred_element_type=jnp.float32)

    @pl.when((pass_id == 0) & first)
    def _init():
        sum_ref[...] = jnp.zeros_like(sum_ref)
        ssq_ref[...] = jnp.zeros_like(ssq_ref)

    @pl.when(pass_id == 0)
    def _acc():
        sum_ref[...] += jnp.sum(y, axis=1, keepdims=True)
        ssq_ref[...] += jnp.sum(y * y, axis=1, keepdims=True)

    @pl.when((pass_id == 1) & first)
    def _finalize():
        mean = sum_ref[...] * inv_m
        var = ssq_ref[...] * inv_m - mean * mean
        sum_ref[...] = mean
        ssq_ref[...] = jax.lax.rsqrt(var + EPS)

    @pl.when(pass_id == 1)
    def _apply():
        a = g_ref[...] * ssq_ref[...]
        d = b_ref[...] - a * sum_ref[...]
        z = a * y + d
        o_ref[...] = jnp.maximum(z, NEG_SLOPE * z)


# ----------------------------------------------------------------------------
# Generation-aware tile / VMEM budgeting.
# ----------------------------------------------------------------------------
def _vmem_budget_bytes():
    cap = 64 * 1024 * 1024                      # conservative fallback (v7x physical)
    try:
        info = pltpu.get_tpu_info()
        c = getattr(info, "vmem_capacity_bytes", None)
        if c:
            cap = int(c)
    except Exception:
        pass
    # Use ~half of physical VMEM as our scoped budget: 64 MiB on v5e/v6e (128 MiB),
    # 32 MiB on v7x (64 MiB).
    return int(min(cap // 2, 64 * 1024 * 1024))


def _pick_tile(sp, kp, cout, tile_budget_bytes):
    """Spatial (lane) tile: largest that fits the per-step double-buffered budget.
    Must be a multiple of 128 or equal to the full spatial extent."""
    per_lane = 2 * (kp * 2 + cout * 4)          # double-buffered P (bf16) + out (f32)
    max_st = min(32 * 1024, max(128, tile_budget_bytes // per_lane))
    if sp <= max_st:
        return sp
    t = (max_st // 128) * 128
    while t >= 128:
        if sp % t == 0:
            return t
        t -= 128
    return sp                                   # no aligned divisor; use full lane dim


# ----------------------------------------------------------------------------
# Fused pallas_call wrapper.
# ----------------------------------------------------------------------------
def _fused_convT_bn_lrelu(w_t, p_t, gamma_col, beta_col, force_recompute=False):
    """w_t: (P, Cout, K) bf16, p_t: (P, N, K, Sp) bf16,
    gamma_col/beta_col: (N*Cout, 1) f32 -> out (P, N, Cout, Sp) f32."""
    n_phase, n_batch, kp, sp = p_t.shape
    cout = w_t.shape[1]

    budget = _vmem_budget_bytes()
    y_bytes = n_phase * n_batch * cout * sp * 4
    resident = (not force_recompute) and (y_bytes <= budget // 2)
    slack = 2 * 1024 * 1024
    tile_budget = budget - slack - (y_bytes if resident else 0)
    st = _pick_tile(sp, kp, cout, max(tile_budget, 1))
    n_tiles = sp // st
    inv_m = 1.0 / float(n_phase * n_batch * sp)          # 1 / (N*Ho*Wo)

    def w_map(p_, ph, n, t):
        return (ph, 0, 0)

    def gb_map(p_, ph, n, t):
        return (n, 0)

    # Output blocks are pinned to block 0 during pass 0 (never written there, so no
    # HBM writeback occurs); pass 1 then visits every block exactly once starting at
    # block 0, so no block index is ever revisited non-consecutively.
    def out_map(p_, ph, n, t):
        return (ph * p_, n * p_, 0, t * p_)

    if resident:
        def p_map(p_, ph, n, t):
            # Pass 1 pins P to the last pass-0 block -> zero HBM re-fetch of patches.
            keep = 1 - p_
            return (ph * keep + (n_phase - 1) * p_,
                    n * keep + (n_batch - 1) * p_,
                    0,
                    t * keep + (n_tiles - 1) * p_)
        kernel = partial(_fused_kernel_resident, inv_m=inv_m,
                         n_batch=n_batch, n_tiles=n_tiles)
        scratch = [pltpu.VMEM((cout, 1), jnp.float32),                    # sum / mean
                   pltpu.VMEM((cout, 1), jnp.float32),                    # ssq / inv-std
                   pltpu.VMEM((n_phase * n_batch * n_tiles, cout, st),    # resident y
                              jnp.float32)]
    else:
        def p_map(p_, ph, n, t):
            return (ph, n, 0, t)
        kernel = partial(_fused_kernel_recompute, inv_m=inv_m)
        scratch = [pltpu.VMEM((cout, 1), jnp.float32),
                   pltpu.VMEM((cout, 1), jnp.float32)]

    return pl.pallas_call(
        kernel,
        out_shape=jax.ShapeDtypeStruct((n_phase, n_batch, cout, sp), jnp.float32),
        grid_spec=pltpu.PrefetchScalarGridSpec(
            num_scalar_prefetch=0,
            grid=(2, n_phase, n_batch, n_tiles),
            in_specs=[
                # per-phase sub-kernel, tiny
                pl.BlockSpec((None, cout, kp), w_map),
                # zero-free patches, streamed per tile (read once on the resident path)
                pl.BlockSpec((None, None, kp, st), p_map),
                # per-sample gamma/beta columns (Cout,1) -- no M-sized replication
                pl.BlockSpec((cout, 1), gb_map),
                pl.BlockSpec((cout, 1), gb_map),
            ],
            out_specs=pl.BlockSpec((None, None, cout, st), out_map),
            scratch_shapes=scratch,
        ),
        compiler_params=pltpu.CompilerParams(
            dimension_semantics=("arbitrary",) * 4,
            vmem_limit_bytes=budget,
        ),
    )(w_t, p_t, gamma_col, beta_col)


# ----------------------------------------------------------------------------
# Wrapper glue (plain JAX): spectral norm, sub-pixel im2col, pixel shuffle.
# ----------------------------------------------------------------------------
def _spectral_normalize(w, key, n_power_iterations=1):
    # spectral_norm uses dim=1 for ConvTranspose2d -> matrix (Cout, Cin*KH*KW).
    # TODO(synk): PyTorch keeps a persistent, converged power-iteration `u` buffer;
    # here `u` is re-initialized from `key` each call (stateless approximation).
    cin, cout, kh, kw = w.shape
    w_mat = jnp.transpose(w, (1, 0, 2, 3)).reshape(cout, -1)
    u = jax.random.normal(key, (cout,), jnp.float32)
    u = u / (jnp.linalg.norm(u) + 1e-12)
    v = None
    for _ in range(n_power_iterations):
        v = w_mat.T @ u
        v = v / (jnp.linalg.norm(v) + 1e-12)
        u = w_mat @ v
        u = u / (jnp.linalg.norm(u) + 1e-12)
    sigma = u @ (w_mat @ v)
    return w / sigma


def standard_generator_block(x, labels, weight, bias, gamma_emb, beta_emb,
                             stride, padding, sn_key, force_recompute=False):
    """Forward of StandardGeneratorBlock (num_classes > 0 branch).

    x: (N,Cin,H,W) f32 NCHW; labels: (N,) int32; weight: (Cin,Cout,KH,KW);
    gamma_emb/beta_emb: (num_classes, Cout).  Returns (N,Cout,Ho,Wo) f32 NCHW.
    """
    N, Cin, H, W = x.shape
    _, Cout, KH, KW = weight.shape
    s, p = stride, padding

    # ConvTranspose2d bias is dropped: under training-mode BatchNorm the per-channel
    # bias is exactly removed by the mean subtraction.
    del bias
    # TODO(synk): BatchNorm running-stats (momentum) update is stateful training
    # bookkeeping and is not modeled; normalization uses batch statistics.

    w_sn = _spectral_normalize(weight, sn_key)

    Ho = (H - 1) * s - 2 * p + KH
    Wo = (W - 1) * s - 2 * p + KW

    # Sub-pixel decomposition: kernel must split evenly into stride^2 phases and the
    # output extents must be divisible by the stride.
    assert KH % s == 0 and KW % s == 0, "sub-pixel path needs kernel_size % stride == 0"
    assert Ho % s == 0 and Wo % s == 0, "sub-pixel path needs output divisible by stride"
    mh, mw = KH // s, KW // s
    kp = Cin * mh * mw
    nh, nw = Ho // s, Wo // s

    pad = max(KH, KW)                                    # generous zero halo
    xpad = jnp.pad(x, ((0, 0), (0, 0), (pad, pad), (pad, pad)))

    # TODO(synk): the im2col patch tensor is still materialized by XLA in HBM
    # (mh*mw-fold blow-up); in-kernel tap assembly from xpad would cut that traffic.
    patch_list, w_list, place = [], [], []
    for rh in range(s):
        khs = list(range(rh, KH, s))
        oh0 = (rh - p) % s                               # output-row residue of phase
        qh0 = (oh0 + p) // s
        for rw in range(s):
            kws = list(range(rw, KW, s))
            ow0 = (rw - p) % s
            qw0 = (ow0 + p) // s

            # Zero-free patches for this phase: out(oh0+i*s, ow0+j*s) uses
            # x[qh0+i-m_h, qw0+j-m_w] paired with W[khs[m_h], kws[m_w]].
            blocks = []
            for m_h in range(mh):
                for m_w in range(mw):
                    r0 = pad + qh0 - m_h
                    c0 = pad + qw0 - m_w
                    blocks.append(xpad[:, :, r0:r0 + nh, c0:c0 + nw])
            ph_patch = jnp.stack(blocks, axis=2)         # (N, Cin, mh*mw, nh, nw)
            patch_list.append(ph_patch.reshape(N, kp, nh * nw))

            wp = w_sn[:, :, khs, :][:, :, :, kws]        # (Cin, Cout, mh, mw)
            w_list.append(wp.transpose(1, 0, 2, 3).reshape(Cout, kp))
            place.append((oh0, ow0))

    p_t = jnp.stack(patch_list, axis=0).astype(jnp.bfloat16)   # (s*s, N, K, Sp)
    w_t = jnp.stack(w_list, axis=0).astype(jnp.bfloat16)       # (s*s, Cout, K)

    gamma_col = gamma_emb[labels].astype(jnp.float32).reshape(N * Cout, 1)
    beta_col = beta_emb[labels].astype(jnp.float32).reshape(N * Cout, 1)

    o_t = _fused_convT_bn_lrelu(w_t, p_t, gamma_col, beta_col,
                                force_recompute=force_recompute)  # (s*s, N, Cout, Sp)

    # Phase interleave as a single pixel-shuffle (reshape + transpose), replacing the
    # previous s^2 strided read-modify-write scatters over the full output.
    order = sorted(range(s * s), key=lambda i: place[i])        # order by (oh0, ow0)
    o_perm = jnp.stack([o_t[i] for i in order], axis=0)         # (s*s, N, Cout, Sp)
    y6 = o_perm.reshape(s, s, N, Cout, nh, nw)
    out = y6.transpose(2, 3, 4, 0, 5, 1).reshape(N, Cout, Ho, Wo)
    return out


# ----------------------------------------------------------------------------
# Pure-JAX reference (f32) for a correctness check of the fused kernel.
# ----------------------------------------------------------------------------
def _reference_forward(x, labels, weight, bias, gamma_emb, beta_emb,
                       stride, padding, sn_key):
    N, Cin, H, W = x.shape
    _, Cout, KH, KW = weight.shape
    w_sn = _spectral_normalize(weight, sn_key)
    w_conv = jnp.flip(w_sn, (2, 3)).transpose(1, 0, 2, 3)       # (Cout, Cin, KH, KW)
    y = jax.lax.conv_general_dilated(
        x, w_conv, window_strides=(1, 1),
        padding=[(KH - 1 - padding, KH - 1 - padding),
                 (KW - 1 - padding, KW - 1 - padding)],
        lhs_dilation=(stride, stride),
        dimension_numbers=("NCHW", "OIHW", "NCHW"))
    y = y + bias.reshape(1, Cout, 1, 1)
    mean = jnp.mean(y, axis=(0, 2, 3), keepdims=True)
    var = jnp.mean((y - mean) ** 2, axis=(0, 2, 3), keepdims=True)
    yhat = (y - mean) * jax.lax.rsqrt(var + EPS)
    g = gamma_emb[labels].reshape(N, Cout, 1, 1)
    b = beta_emb[labels].reshape(N, Cout, 1, 1)
    z = g * yhat + b
    return jnp.where(z >= 0, z, NEG_SLOPE * z)


if __name__ == "__main__":
    key = jax.random.PRNGKey(0)
    k_x, k_w, k_b, k_u, k_lab, k_g, k_be = jax.random.split(key, 7)

    # StandardGeneratorBlock(4, 8, kernel_size=4, padding=1, stride=2, num_classes=5)
    N, Cin, H, W = 2, 4, 16, 16
    Cout, K, stride, padding = 8, 4, 2, 1
    num_classes = 5

    x = jax.random.normal(k_x, (N, Cin, H, W), jnp.float32)
    labels = jax.random.randint(k_lab, (N,), 0, num_classes, jnp.int32)

    # ConvTranspose2d weight (Cin, Cout, KH, KW), Xavier-uniform init.
    fan_in, fan_out = Cout * K * K, Cin * K * K
    bound = math.sqrt(6.0 / (fan_in + fan_out))
    weight = jax.random.uniform(k_w, (Cin, Cout, K, K), jnp.float32, -bound, bound)
    bias = jax.random.uniform(k_b, (Cout,), jnp.float32,
                              -1.0 / math.sqrt(fan_in), 1.0 / math.sqrt(fan_in))

    # ConditionalBatchNorm2d embeddings init to ones/zeros in __init__; perturb
    # slightly so the conditional-affine path is actually exercised by the check.
    gamma_emb = 1.0 + 0.1 * jax.random.normal(k_g, (num_classes, Cout), jnp.float32)
    beta_emb = 0.1 * jax.random.normal(k_be, (num_classes, Cout), jnp.float32)

    out = standard_generator_block(x, labels, weight, bias, gamma_emb, beta_emb,
                                   stride, padding, k_u)
    out = jax.block_until_ready(out)

    Ho = (H - 1) * stride - 2 * padding + K
    assert out.shape == (N, Cout, Ho, Ho), out.shape

    # Correctness vs pure-JAX f32 reference (tolerance covers bf16 MXU inputs).
    ref = _reference_forward(x, labels, weight, bias, gamma_emb, beta_emb,
                             stride, padding, k_u)
    err = float(jnp.max(jnp.abs(out - ref)))
    assert err < 0.1, f"max abs error (resident path) vs reference = {err}"

    # Also exercise the large-activation fallback (recompute-in-pass-1) path.
    out2 = standard_generator_block(x, labels, weight, bias, gamma_emb, beta_emb,
                                    stride, padding, k_u, force_recompute=True)
    out2 = jax.block_until_ready(out2)
    err2 = float(jnp.max(jnp.abs(out2 - ref)))
    assert err2 < 0.1, f"max abs error (recompute path) vs reference = {err2}"

    print("KERNEL_OK")
</pallas_src>

<mosaic_0001>
module attributes {stable_mosaic.version = 11 : i64} {
  func.func @_fused_kernel_resident(%arg0: i32, %arg1: i32, %arg2: i32, %arg3: i32, %arg4: memref<1x8x16xbf16, #tpu.memory_space<vmem>>, %arg5: memref<1x1x16x256xbf16, #tpu.memory_space<vmem>>, %arg6: memref<8x1xf32, #tpu.memory_space<vmem>>, %arg7: memref<8x1xf32, #tpu.memory_space<vmem>>, %arg8: memref<1x1x8x256xf32, #tpu.memory_space<vmem>>, %arg9: memref<8x1xf32, #tpu.memory_space<vmem>>, %arg10: memref<8x1xf32, #tpu.memory_space<vmem>>, %arg11: memref<8x8x256xf32, #tpu.memory_space<vmem>>) attributes {dimension_semantics = [#tpu.dimension_semantics<arbitrary>, #tpu.dimension_semantics<arbitrary>, #tpu.dimension_semantics<arbitrary>, #tpu.dimension_semantics<arbitrary>], iteration_bounds = array<i64: 2, 4, 2, 1>, scalar_prefetch = 0 : i64, scratch_operands = 3 : i64, tpu.core_type = #tpu.core_type<tc>, window_params = [{transform_indices = @transform_0, window_bounds = array<i64: 1, 8, 16>}, {transform_indices = @transform_1, window_bounds = array<i64: 1, 1, 16, 256>}, {transform_indices = @transform_2, window_bounds = array<i64: 8, 1>}, {transform_indices = @transform_3, window_bounds = array<i64: 8, 1>}, {transform_indices = @transform_4, window_bounds = array<i64: 1, 1, 8, 256>}]} {
    %c0_i32 = arith.constant 0 : i32
    %0 = arith.cmpi eq, %arg1, %c0_i32 : i32
    %c0_i32_0 = arith.constant 0 : i32
    %1 = arith.cmpi eq, %arg2, %c0_i32_0 : i32
    %2 = arith.andi %0, %1 : i1
    %c0_i32_1 = arith.constant 0 : i32
    %3 = arith.cmpi eq, %arg3, %c0_i32_1 : i32
    %4 = arith.andi %2, %3 : i1
    %c2_i32 = arith.constant 2 : i32
    %5 = arith.muli %arg1, %c2_i32 : i32
    %6 = arith.addi %5, %arg2 : i32
    %c1_i32 = arith.constant 1 : i32
    %7 = arith.muli %6, %c1_i32 : i32
    %8 = arith.addi %7, %arg3 : i32
    %c0_i32_2 = arith.constant 0 : i32
    %9 = arith.cmpi eq, %arg0, %c0_i32_2 : i32
    %10 = arith.extui %9 : i1 to i32
    %c0_i32_3 = arith.constant 0 : i32
    %11 = arith.cmpi ne, %10, %c0_i32_3 : i32
    scf.if %11 {
      %15 = arith.extui %4 : i1 to i32
      %c0_i32_6 = arith.constant 0 : i32
      %16 = arith.cmpi ne, %15, %c0_i32_6 : i32
      scf.if %16 {
        %cst_25 = arith.constant 0.000000e+00 : f32
        %37 = vector.broadcast %cst_25 : f32 to vector<8x1xf32>
        %c0_26 = arith.constant 0 : index
        %c0_27 = arith.constant 0 : index
        %38 = vector.load %arg9[%c0_26, %c0_27] : memref<8x1xf32, #tpu.memory_space<vmem>>, vector<8x1xf32>
        tpu.vector_store %arg9[%c0_26, %c0_27], %37 {strides = array<i32>} : memref<8x1xf32, #tpu.memory_space<vmem>>, vector<8x1xf32>,
        %cst_28 = arith.constant 0.000000e+00 : f32
        %39 = vector.broadcast %cst_28 : f32 to vector<8x1xf32>
        %c0_29 = arith.constant 0 : index
        %c0_30 = arith.constant 0 : index
        %40 = vector.load %arg10[%c0_29, %c0_30] : memref<8x1xf32, #tpu.memory_space<vmem>>, vector<8x1xf32>
        tpu.vector_store %arg10[%c0_29, %c0_30], %39 {strides = array<i32>} : memref<8x1xf32, #tpu.memory_space<vmem>>, vector<8x1xf32>,
      } else {
      }
      %c0 = arith.constant 0 : index
      %c0_7 = arith.constant 0 : index
      %c0_8 = arith.constant 0 : index
      %17 = vector.load %arg4[%c0, %c0_7, %c0_8] : memref<1x8x16xbf16, #tpu.memory_space<vmem>>, vector<1x8x16xbf16>
      %18 = vector.shape_cast %17 : vector<1x8x16xbf16> to vector<8x16xbf16>
      %c0_9 = arith.constant 0 : index
      %c0_10 = arith.constant 0 : index
      %c0_11 = arith.constant 0 : index
      %c0_12 = arith.constant 0 : index
      %19 = vector.load %arg5[%c0_9, %c0_10, %c0_11, %c0_12] : memref<1x1x16x256xbf16, #tpu.memory_space<vmem>>, vector<1x1x16x256xbf16>
      %20 = vector.shape_cast %19 : vector<1x1x16x256xbf16> to vector<16x256xbf16>
      %cst = arith.constant dense<0.000000e+00> : vector<8x256xf32>
      %21 = tpu.matmul %18, %20, %cst {dimension_numbers = #tpu.dot_dimension_numbers<[1], [0], [0], [1], [0, 0, 1, 1], [], []>} : vector<8x16xbf16>, vector<16x256xbf16>, vector<8x256xf32> -> vector<8x256xf32>
      %22 = arith.index_cast %8 : i32 to index
      %c0_13 = arith.constant 0 : index
      %c0_14 = arith.constant 0 : index
      %23 = vector.load %arg11[%22, %c0_13, %c0_14] : memref<8x8x256xf32, #tpu.memory_space<vmem>>, vector<1x8x256xf32>
      %24 = vector.shape_cast %23 : vector<1x8x256xf32> to vector<8x256xf32>
      %25 = vector.shape_cast %21 : vector<8x256xf32> to vector<1x8x256xf32>
      tpu.vector_store %arg11[%22, %c0_13, %c0_14], %25 {strides = array<i32>} : memref<8x8x256xf32, #tpu.memory_space<vmem>>, vector<1x8x256xf32>,
      %c0_15 = arith.constant 0 : index
      %c0_16 = arith.constant 0 : index
      %26 = vector.load %arg9[%c0_15, %c0_16] : memref<8x1xf32, #tpu.memory_space<vmem>>, vector<8x1xf32>
      %cst_17 = arith.constant dense<0.000000e+00> : vector<8xf32>
      %27 = vector.multi_reduction <add>, %21, %cst_17 [1] : vector<8x256xf32> to vector<8xf32>
      %28 = vector.shape_cast %27 : vector<8xf32> to vector<8x1xf32>
      %29 = arith.addf %26, %28 : vector<8x1xf32>
      %c0_18 = arith.constant 0 : index
      %c0_19 = arith.constant 0 : index
      %30 = vector.load %arg9[%c0_18, %c0_19] : memref<8x1xf32, #tpu.memory_space<vmem>>, vector<8x1xf32>
      tpu.vector_store %arg9[%c0_18, %c0_19], %29 {strides = array<i32>} : memref<8x1xf32, #tpu.memory_space<vmem>>, vector<8x1xf32>,
      %c0_20 = arith.constant 0 : index
      %c0_21 = arith.constant 0 : index
      %31 = vector.load %arg10[%c0_20, %c0_21] : memref<8x1xf32, #tpu.memory_space<vmem>>, vector<8x1xf32>
      %32 = arith.mulf %21, %21 : vector<8x256xf32>
      %cst_22 = arith.constant dense<0.000000e+00> : vector<8xf32>
      %33 = vector.multi_reduction <add>, %32, %cst_22 [1] : vector<8x256xf32> to vector<8xf32>
      %34 = vector.shape_cast %33 : vector<8xf32> to vector<8x1xf32>
      %35 = arith.addf %31, %34 : vector<8x1xf32>
      %c0_23 = arith.constant 0 : index
      %c0_24 = arith.constant 0 : index
      %36 = vector.load %arg10[%c0_23, %c0_24] : memref<8x1xf32, #tpu.memory_space<vmem>>, vector<8x1xf32>
      tpu.vector_store %arg10[%c0_23, %c0_24], %35 {strides = array<i32>} : memref<8x1xf32, #tpu.memory_space<vmem>>, vector<8x1xf32>,
    } else {
    }
    %c1_i32_4 = arith.constant 1 : i32
    %12 = arith.cmpi eq, %arg0, %c1_i32_4 : i32
    %13 = arith.extui %12 : i1 to i32
    %c0_i32_5 = arith.constant 0 : i32
    %14 = arith.cmpi ne, %13, %c0_i32_5 : i32
    scf.if %14 {
      %15 = arith.extui %4 : i1 to i32
      %c0_i32_6 = arith.constant 0 : i32
      %16 = arith.cmpi ne, %15, %c0_i32_6 : i32
      scf.if %16 {
        %c0_20 = arith.constant 0 : index
        %c0_21 = arith.constant 0 : index
        %37 = vector.load %arg9[%c0_20, %c0_21] : memref<8x1xf32, #tpu.memory_space<vmem>>, vector<8x1xf32>
        %cst_22 = arith.constant 4.8828125E-4 : f32
        %38 = vector.broadcast %cst_22 : f32 to vector<8x1xf32>
        %39 = arith.mulf %37, %38 : vector<8x1xf32>
        %c0_23 = arith.constant 0 : index
        %c0_24 = arith.constant 0 : index
        %40 = vector.load %arg10[%c0_23, %c0_24] : memref<8x1xf32, #tpu.memory_space<vmem>>, vector<8x1xf32>
        %cst_25 = arith.constant 4.8828125E-4 : f32
        %41 = vector.broadcast %cst_25 : f32 to vector<8x1xf32>
        %42 = arith.mulf %40, %41 : vector<8x1xf32>
        %43 = arith.mulf %39, %39 : vector<8x1xf32>
        %44 = arith.subf %42, %43 : vector<8x1xf32>
        %c0_26 = arith.constant 0 : index
        %c0_27 = arith.constant 0 : index
        %45 = vector.load %arg9[%c0_26, %c0_27] : memref<8x1xf32, #tpu.memory_space<vmem>>, vector<8x1xf32>
        tpu.vector_store %arg9[%c0_26, %c0_27], %39 {strides = array<i32>} : memref<8x1xf32, #tpu.memory_space<vmem>>, vector<8x1xf32>,
        %cst_28 = arith.constant 9.99999974E-6 : f32
        %46 = vector.broadcast %cst_28 : f32 to vector<8x1xf32>
        %47 = arith.addf %44, %46 : vector<8x1xf32>
        %48 = math.rsqrt %47 : vector<8x1xf32>
        %c0_29 = arith.constant 0 : index
        %c0_30 = arith.constant 0 : index
        %49 = vector.load %arg10[%c0_29, %c0_30] : memref<8x1xf32, #tpu.memory_space<vmem>>, vector<8x1xf32>
        tpu.vector_store %arg10[%c0_29, %c0_30], %48 {strides = array<i32>} : memref<8x1xf32, #tpu.memory_space<vmem>>, vector<8x1xf32>,
      } else {
      }
      %17 = arith.index_cast %8 : i32 to index
      %c0 = arith.constant 0 : index
      %c0_7 = arith.constant 0 : index
      %18 = vector.load %arg11[%17, %c0, %c0_7] : memref<8x8x256xf32, #tpu.memory_space<vmem>>, vector<1x8x256xf32>
      %19 = vector.shape_cast %18 : vector<1x8x256xf32> to vector<8x256xf32>
      %c0_8 = arith.constant 0 : index
      %c0_9 = arith.constant 0 : index
      %20 = vector.load %arg6[%c0_8, %c0_9] : memref<8x1xf32, #tpu.memory_space<vmem>>, vector<8x1xf32>
      %c0_10 = arith.constant 0 : index
      %c0_11 = arith.constant 0 : index
      %21 = vector.load %arg10[%c0_10, %c0_11] : memref<8x1xf32, #tpu.memory_space<vmem>>, vector<8x1xf32>
      %22 = arith.mulf %20, %21 : vector<8x1xf32>
      %c0_12 = arith.constant 0 : index
      %c0_13 = arith.constant 0 : index
      %23 = vector.load %arg7[%c0_12, %c0_13] : memref<8x1xf32, #tpu.memory_space<vmem>>, vector<8x1xf32>
      %c0_14 = arith.constant 0 : index
      %c0_15 = arith.constant 0 : index
      %24 = vector.load %arg9[%c0_14, %c0_15] : memref<8x1xf32, #tpu.memory_space<vmem>>, vector<8x1xf32>
      %25 = arith.mulf %22, %24 : vector<8x1xf32>
      %26 = arith.subf %23, %25 : vector<8x1xf32>
      %27 = vector.broadcast %22 : vector<8x1xf32> to vector<8x256xf32>
      %28 = arith.mulf %27, %19 : vector<8x256xf32>
      %29 = vector.broadcast %26 : vector<8x1xf32> to vector<8x256xf32>
      %30 = arith.addf %28, %29 : vector<8x256xf32>
      %cst = arith.constant 2.000000e-01 : f32
      %31 = vector.broadcast %cst : f32 to vector<8x256xf32>
      %32 = arith.mulf %31, %30 : vector<8x256xf32>
      %33 = arith.maximumf %30, %32 : vector<8x256xf32>
      %c0_16 = arith.constant 0 : index
      %c0_17 = arith.constant 0 : index
      %c0_18 = arith.constant 0 : index
      %c0_19 = arith.constant 0 : index
      %34 = vector.load %arg8[%c0_16, %c0_17, %c0_18, %c0_19] : memref<1x1x8x256xf32, #tpu.memory_space<vmem>>, vector<1x1x8x256xf32>
      %35 = vector.shape_cast %34 : vector<1x1x8x256xf32> to vector<8x256xf32>
      %36 = vector.shape_cast %33 : vector<8x256xf32> to vector<1x1x8x256xf32>
      tpu.vector_store %arg8[%c0_16, %c0_17, %c0_18, %c0_19], %36 {strides = array<i32>} : memref<1x1x8x256xf32, #tpu.memory_space<vmem>>, vector<1x1x8x256xf32>,
    } else {
    }
    return
  }
  func.func @transform_0(%arg0: i32, %arg1: i32, %arg2: i32, %arg3: i32) -> (i32, i32, i32) {
    %c0_i32 = arith.constant 0 : i32
    %c0_i32_0 = arith.constant 0 : i32
    %c0_i32_1 = arith.constant 0 : i32
    return %arg1, %c0_i32, %c0_i32_0 : i32, i32, i32
  }
  func.func @transform_1(%arg0: i32, %arg1: i32, %arg2: i32, %arg3: i32) -> (i32, i32, i32, i32) {
    %c1_i32 = arith.constant 1 : i32
    %0 = arith.subi %c1_i32, %arg0 : i32
    %1 = arith.muli %arg1, %0 : i32
    %c3_i32 = arith.constant 3 : i32
    %2 = arith.muli %c3_i32, %arg0 : i32
    %3 = arith.addi %1, %2 : i32
    %4 = arith.muli %arg2, %0 : i32
    %c1_i32_0 = arith.constant 1 : i32
    %5 = arith.muli %c1_i32_0, %arg0 : i32
    %6 = arith.addi %4, %5 : i32
    %7 = arith.muli %arg3, %0 : i32
    %c0_i32 = arith.constant 0 : i32
    %8 = arith.muli %c0_i32, %arg0 : i32
    %9 = arith.addi %7, %8 : i32
    %c0_i32_1 = arith.constant 0 : i32
    %c0_i32_2 = arith.constant 0 : i32
    return %3, %6, %c0_i32_1, %9 : i32, i32, i32, i32
  }
  func.func @transform_2(%arg0: i32, %arg1: i32, %arg2: i32, %arg3: i32) -> (i32, i32) {
    %c0_i32 = arith.constant 0 : i32
    %c0_i32_0 = arith.constant 0 : i32
    return %arg2, %c0_i32 : i32, i32
  }
  func.func @transform_3(%arg0: i32, %arg1: i32, %arg2: i32, %arg3: i32) -> (i32, i32) {
    %c0_i32 = arith.constant 0 : i32
    %c0_i32_0 = arith.constant 0 : i32
    return %arg2, %c0_i32 : i32, i32
  }
  func.func @transform_4(%arg0: i32, %arg1: i32, %arg2: i32, %arg3: i32) -> (i32, i32, i32, i32) {
    %0 = arith.muli %arg1, %arg0 : i32
    %1 = arith.muli %arg2, %arg0 : i32
    %2 = arith.muli %arg3, %arg0 : i32
    %c0_i32 = arith.constant 0 : i32
    %c0_i32_0 = arith.constant 0 : i32
    return %0, %1, %c0_i32, %2 : i32, i32, i32, i32
  }
}

</mosaic_0001>

<llo_original>
// kernel: tpu_custom_call.1
$region0: #{tpu_custom_call.1}
  #allocation0 [shape = 'u32[]', space=smem, size = 0x4, offset = 0x4, fixed_abs, tag = 'smem constant byte address 0x4 - core index']
  #allocation1 [shape = 'u32[72,128]{1,0:T(1,128)}', space=vmem, size = 0x9000, scoped, tag = 'internal scratch']
  #allocation2 [shape = 'f32[8,1]{1,0:T(8,128)}', space=vmem, size = 0x1000, scoped, tag = 'scratch operand']
  #allocation3 [shape = 'f32[8,1]{1,0:T(8,128)}', space=vmem, size = 0x1000, scoped, tag = 'scratch operand']
  #allocation4 [shape = 'f32[8,8,256]{2,1,0:T(8,128)}', space=vmem, size = 0x10000, scoped, tag = 'scratch operand']
  %s0 = inlined_call_operand.vmem [shape: bf16[4,8,16], index: 0, kind: input, shape index: {}]
  %s1 = inlined_call_operand.hbm [shape: bf16[4,2,16,256], index: 1, kind: input, shape index: {}]
  %s2 = inlined_call_operand.vmem [shape: f32[16,1], index: 2, kind: input, shape index: {}]
  %s3 = inlined_call_operand.vmem [shape: f32[16,1], index: 3, kind: input, shape index: {}]
  %s4 = inlined_call_operand.hbm [shape: f32[4,2,8,256], index: 4, kind: output, shape index: {}]
  %s5 = sld [smem:[#allocation0]]
  $region69: #{tpu_custom_call.1} parent=0
    _
  %s7 = ssub.s32 1, %s5
  %s8 = scalar_select 0, %s7, %s5
  $region1: #{tpu_custom_call.1} parent=0
    #allocation5 [shape = 'u8[16384]{0}', space=vmem, size = 0x4000, scoped, tag = 'input window, operand 1']
    #allocation6 [shape = 's32[2]{0}', space=sflag, size = 0x8, scoped, tag = 'scoped memory for tpu_custom_call.1']
    #allocation7 [shape = 's32[2]{0}', space=sflag, size = 0x8, scoped, tag = 'scoped memory for tpu_custom_call.1']
    #allocation8 [shape = 'u8[16384]{0}', space=vmem, size = 0x4000, scoped, tag = 'output window, operand 0']
    %9 = vsyncpa [#allocation6], 0
    %s10 = scalar_lea.sflag [#allocation6], 1
    %11 = vsyncpa %s10, 0
    %12 = vsyncpa [#allocation7], 0
    %s13 = scalar_lea.sflag [#allocation7], 1
    %14 = vsyncpa %s13, 0
    loop: start=0, step=1, limit=18
    $region2: #{tpu_custom_call.1} parent=1 // loop_pre_header
      _
    $region3: #{tpu_custom_call.1} parent=1 // loop_header
      %s16 = sphi 0, %s20
      %p17 = scmp.ge.s32.totalorder %s16, 18
      %s23 = sphi 0, %s49
      %s24 = sphi 0, %s45
      %s25 = sphi 0, %s41
      %s26 = sphi 0, %s37
      %s27 = sphi 0, %s23
      %s28 = sphi 0, %s24
      %s29 = sphi 0, %s25
      %s30 = sphi 0, %s26
      %s31 = sphi 0, %s27
      %s32 = sphi 0, %s28
      %s33 = sphi 0, %s29
      %s34 = sphi 0, %s30
      %s52 = sphi 0, %s54
      %s55 = sphi 0, %s52
      %s56 = sphi 0, %s55
      %s72 = sphi 0, %s56
      %s96 = sphi 0, %s98
      %s99 = sphi 0, %s96
      %s100 = sphi 0, %s99
      %s116 = sphi 0, %s100
      %s122 = sphi 0, %s124
      %s125 = sphi 0, %s122
      %s126 = sphi 0, %s125
      %s142 = sphi 0, %s126
      %s148 = sphi 0, %s150
      %s151 = sphi 0, %s148
      %s152 = sphi 0, %s151
      %s168 = sphi 0, %s152
      %s184 = sphi 0, %s186
      %s187 = sphi 0, %s184
      %s188 = sphi 0, %s187
      %s204 = sphi 0, %s188
    $region4: #{tpu_custom_call.1} parent=1 // loop_header_branch
      %19 = sbr.rel (%p17) target = $region8
    $region5: #{tpu_custom_call.1} parent=1 // loop_body
      %s21 = ssub.s32 %s16, 1
      %s22 = ssub.s32 %s16, 2
      %s35 = sadd.s32 1, %s26
      %p36 = scmp.ge.s32.totalorder %s35, 1
      %s37 = scalar_select %p36, 0, %s35
      %s38 = sadd.s32 1, %s25
      %s39 = scalar_select %p36, %s38, %s25
      %p40 = scmp.ge.s32.totalorder %s39, 2
      %s41 = scalar_select %p40, 0, %s39
      %s42 = sadd.s32 1, %s24
      %s43 = scalar_select %p40, %s42, %s24
      %p44 = scmp.ge.s32.totalorder %s43, 4
      %s45 = scalar_select %p44, 0, %s43
      %s46 = sadd.s32 1, %s23
      %s47 = scalar_select %p44, %s46, %s23
      %p48 = scmp.ge.s32.totalorder %s47, 2
      %s49 = scalar_select %p48, 0, %s47
      %s50 = ssub.s32 %s24, %s45
      %p51 = scmp.eq.s32.totalorder %s50, 0
      %s53 = sadd.s32 %s52, 1
      %s54 = scalar_select %p51, %s52, %s53
      %p57 = pneg %p51
      %p58 = scmp.eq.s32.totalorder %s16, 15
      %p59 = por %p57, %p58
      %p60 = scmp.ne.s32.totalorder %s52, %s55
      %p61 = scmp.eq.s32.totalorder %s16, 0
      %p62 = por %p60, %p61
      %p63 = scmp.ne.s32.totalorder %s52, %s55
      %p64 = scmp.eq.s32.totalorder %s21, 15
      %p65 = por %p63, %p64
      %p66 = scmp.ne.s32.totalorder %s55, %s56
      %p67 = scmp.eq.s32.totalorder %s21, 0
      %p68 = por %p66, %p67
      %p69 = scmp.ne.s32.totalorder %s55, %s56
      %p70 = scmp.eq.s32.totalorder %s22, 15
      %p71 = por %p69, %p70
      %p73 = scmp.ne.s32.totalorder %s56, %s72
      %p74 = scmp.eq.s32.totalorder %s22, 0
      %p75 = por %p73, %p74
      %s76 = ssub.s32 1, %s23
      %s77 = smul.u32 %s24, %s76
      %s78 = smul.u32 %s23, 3
      %s79 = sadd.s32 %s77, %s78
      %s80 = smul.u32 %s25, %s76
      %s81 = sadd.s32 %s80, %s23
      %s82 = smul.u32 %s26, %s76
      %s83 = ssub.s32 1, %s49
      %s84 = smul.u32 %s45, %s83
      %s85 = smul.u32 %s49, 3
      %s86 = sadd.s32 %s84, %s85
      %s87 = smul.u32 %s41, %s83
      %s88 = sadd.s32 %s87, %s49
      %s89 = smul.u32 %s37, %s83
      %s90 = ssub.s32 %s79, %s86
      %s91 = ssub.s32 %s81, %s88
      %s92 = sor.u32 %s90, %s91
      %s93 = ssub.s32 %s82, %s89
      %s94 = sor.u32 %s92, %s93
      %p95 = scmp.eq.s32.totalorder %s94, 0
      %s97 = sadd.s32 %s96, 1
      %s98 = scalar_select %p95, %s96, %s97
      %p101 = pneg %p95
      %p102 = scmp.eq.s32.totalorder %s16, 15
      %p103 = por %p101, %p102
      %p104 = scmp.ne.s32.totalorder %s96, %s99
      %p105 = scmp.eq.s32.totalorder %s16, 0
      %p106 = por %p104, %p105
      %p107 = scmp.ne.s32.totalorder %s96, %s99
      %p108 = scmp.eq.s32.totalorder %s21, 15
      %p109 = por %p107, %p108
      %p110 = scmp.ne.s32.totalorder %s99, %s100
      %p111 = scmp.eq.s32.totalorder %s21, 0
      %p112 = por %p110, %p111
      %p113 = scmp.ne.s32.totalorder %s99, %s100
      %p114 = scmp.eq.s32.totalorder %s22, 15
      %p115 = por %p113, %p114
      %p117 = scmp.ne.s32.totalorder %s100, %s116
      %p118 = scmp.eq.s32.totalorder %s22, 0
      %p119 = por %p117, %p118
      %s120 = ssub.s32 %s25, %s41
      %p121 = scmp.eq.s32.totalorder %s120, 0
      %s123 = sadd.s32 %s122, 1
      %s124 = scalar_select %p121, %s122, %s123
      %p127 = pneg %p121
      %p128 = scmp.eq.s32.totalorder %s16, 15
      %p129 = por %p127, %p128
      %p130 = scmp.ne.s32.totalorder %s122, %s125
      %p131 = scmp.eq.s32.totalorder %s16, 0
      %p132 = por %p130, %p131
      %p133 = scmp.ne.s32.totalorder %s122, %s125
      %p134 = scmp.eq.s32.totalorder %s21, 15
      %p135 = por %p133, %p134
      %p136 = scmp.ne.s32.totalorder %s125, %s126
      %p137 = scmp.eq.s32.totalorder %s21, 0
      %p138 = por %p136, %p137
      %p139 = scmp.ne.s32.totalorder %s125, %s126
      %p140 = scmp.eq.s32.totalorder %s22, 15
      %p141 = por %p139, %p140
      %p143 = scmp.ne.s32.totalorder %s126, %s142
      %p144 = scmp.eq.s32.totalorder %s22, 0
      %p145 = por %p143, %p144
      %s146 = ssub.s32 %s25, %s41
      %p147 = scmp.eq.s32.totalorder %s146, 0
      %s149 = sadd.s32 %s148, 1
      %s150 = scalar_select %p147, %s148, %s149
      %p153 = pneg %p147
      %p154 = scmp.eq.s32.totalorder %s16, 15
      %p155 = por %p153, %p154
      %p156 = scmp.ne.s32.totalorder %s148, %s151
      %p157 = scmp.eq.s32.totalorder %s16, 0
      %p158 = por %p156, %p157
      %p159 = scmp.ne.s32.totalorder %s148, %s151
      %p160 = scmp.eq.s32.totalorder %s21, 15
      %p161 = por %p159, %p160
      %p162 = scmp.ne.s32.totalorder %s151, %s152
      %p163 = scmp.eq.s32.totalorder %s21, 0
      %p164 = por %p162, %p163
      %p165 = scmp.ne.s32.totalorder %s151, %s152
      %p166 = scmp.eq.s32.totalorder %s22, 15
      %p167 = por %p165, %p166
      %p169 = scmp.ne.s32.totalorder %s152, %s168
      %p170 = scmp.eq.s32.totalorder %s22, 0
      %p171 = por %p169, %p170
      %s172 = smul.u32 %s24, %s23
      %s173 = smul.u32 %s25, %s23
      %s174 = smul.u32 %s26, %s23
      %s175 = smul.u32 %s45, %s49
      %s176 = smul.u32 %s41, %s49
      %s177 = smul.u32 %s37, %s49
      %s178 = ssub.s32 %s172, %s175
      %s179 = ssub.s32 %s173, %s176
      %s180 = sor.u32 %s178, %s179
      %s181 = ssub.s32 %s174, %s177
      %s182 = sor.u32 %s180, %s181
      %p183 = scmp.eq.s32.totalorder %s182, 0
      %s185 = sadd.s32 %s184, 1
      %s186 = scalar_select %p183, %s184, %s185
      %p189 = pneg %p183
      %p190 = scmp.eq.s32.totalorder %s16, 15
      %p191 = por %p189, %p190
      %p192 = scmp.ne.s32.totalorder %s184, %s187
      %p193 = scmp.eq.s32.totalorder %s16, 0
      %p194 = por %p192, %p193
      %p195 = scmp.ne.s32.totalorder %s184, %s187
      %p196 = scmp.eq.s32.totalorder %s21, 15
      %p197 = por %p195, %p196
      %p198 = scmp.ne.s32.totalorder %s187, %s188
      %p199 = scmp.eq.s32.totalorder %s21, 0
      %p200 = por %p198, %p199
      %p201 = scmp.ne.s32.totalorder %s187, %s188
      %p202 = scmp.eq.s32.totalorder %s22, 15
      %p203 = por %p201, %p202
      %p205 = scmp.ne.s32.totalorder %s188, %s204
      %p206 = scmp.eq.s32.totalorder %s22, 0
      %p207 = por %p205, %p206
      %p208 = scmp.le.s32.totalorder 1, %s16
      %p209 = scmp.lt.s32.totalorder %s16, 17
      %p210 = pnand %p208, %p209
      %p211 = pneg %p210
      // Predicated region
      $region9: #{tpu_custom_call.1} parent=5 // pred_check
        _
      $region10: #{tpu_custom_call.1} parent=5 // pred_check_branch
        %213 = sbr.rel (%p210) target = $region12
      $region11: #{tpu_custom_call.1} parent=5 // pred_region
        %s214 = ssub.s32 %s16, 1
      $region12: #{tpu_custom_call.1} parent=5 // pred_fallthru
        _
      %p215 = scmp.lt.s32.totalorder %s16, 16
      // Predicated region
      $region13: #{tpu_custom_call.1} parent=5 // pred_check
        %p216 = pneg %p215
      $region14: #{tpu_custom_call.1} parent=5 // pred_check_branch
        %218 = sbr.rel (%p216) target = $region16
      $region15: #{tpu_custom_call.1} parent=5 // pred_region
        // Predicated region
        $region17: #{tpu_custom_call.1} parent=15 // pred_check
          %p219 = pneg %p62
        $region18: #{tpu_custom_call.1} parent=15 // pred_check_branch
          %221 = sbr.rel (%p219) target = $region20
        $region19: #{tpu_custom_call.1} parent=15 // pred_region
          %p222 = scmp.lt.s32.totalorder %s24, 3
          %s223 = scalar_select %p222, %s24, 3
          %s224 = smul.addr %s223, 4
          %s225 = scalar_lea.vmem %s0, %s224
        $region20: #{tpu_custom_call.1} parent=15 // pred_fallthru
          _
        // Predicated region
        $region21: #{tpu_custom_call.1} parent=15 // pred_check
          %p226 = pneg %p106
        $region22: #{tpu_custom_call.1} parent=15 // pred_check_branch
          %228 = sbr.rel (%p226) target = $region24
        $region23: #{tpu_custom_call.1} parent=15 // pred_region
          %s229 = sand.u32 %s96, 1
          %s230 = scalar_lea.sflag [#allocation6], %s229
          %s231 = sand.u32 %s96, 1
          %s232 = smul.addr %s231, 16
          %s233 = scalar_lea.vmem [#allocation5], %s232
          %s234 = ssub.s32 1, %s23
          %s235 = smul.u32 %s24, %s234
          %s236 = smul.u32 %s23, 3
          %s237 = sadd.s32 %s235, %s236
          %s238 = smul.u32 %s25, %s234
          %s239 = sadd.s32 %s238, %s23
          %s240 = smul.u32 %s26, %s234
          %s241 = smul.u32 2, %s240
          %243 = vsyncadd %s230, 0
          %s244 = smul.addr %s239, 4
          %s245 = sadd.s32 %s241, %s244
          %s246 = smul.addr %s237, 8
          %s247 = sadd.s32 %s245, %s246
          %s248 = smul.addr %s247, 4
          %s249 = scalar_lea.hbm %s1, %s248
          %s250 = sshll.u32 %s249, 4
          %s251 = int_to_ptr.hbm [resolvable:$true] %s250
          %s252 = sshll.u32 %s233, 4
          %s253 = int_to_ptr.vmem [resolvable:$true] %s252
          %258 = dma.hbm_to_vmem [thread:$0]  %s251, 256, %s253, %s230, 128, 128, 8
        $region24: #{tpu_custom_call.1} parent=15 // pred_fallthru
          _
        // Predicated region
        $region25: #{tpu_custom_call.1} parent=15 // pred_check
          %p259 = pneg %p132
        $region26: #{tpu_custom_call.1} parent=15 // pred_check_branch
          %261 = sbr.rel (%p259) target = $region28
        $region27: #{tpu_custom_call.1} parent=15 // pred_region
          %p262 = scmp.lt.s32.totalorder %s25, 1
          %s263 = scalar_select %p262, %s25, 1
          %s264 = smul.addr %s263, 8
          %s265 = scalar_lea.vmem %s2, %s264
        $region28: #{tpu_custom_call.1} parent=15 // pred_fallthru
          _
        // Predicated region
        $region29: #{tpu_custom_call.1} parent=15 // pred_check
          %p266 = pneg %p158
        $region30: #{tpu_custom_call.1} parent=15 // pred_check_branch
          %268 = sbr.rel (%p266) target = $region32
        $region31: #{tpu_custom_call.1} parent=15 // pred_region
          %p269 = scmp.lt.s32.totalorder %s25, 1
          %s270 = scalar_select %p269, %s25, 1
          %s271 = smul.addr %s270, 8
          %s272 = scalar_lea.vmem %s3, %s271
        $region32: #{tpu_custom_call.1} parent=15 // pred_fallthru
          _
      $region16: #{tpu_custom_call.1} parent=5 // pred_fallthru
        _
      %p273 = scmp.le.s32.totalorder 1, %s16
      %p274 = scmp.lt.s32.totalorder %s16, 17
      %p275 = pnand %p273, %p274
      %p276 = pneg %p275
      // Predicated region
      $region33: #{tpu_custom_call.1} parent=5 // pred_check
        _
      $region34: #{tpu_custom_call.1} parent=5 // pred_check_branch
        %278 = sbr.rel (%p275) target = $region36
      $region35: #{tpu_custom_call.1} parent=5 // pred_region
        %s279 = ssub.s32 %s16, 1
        %s280 = sand.u32 %s99, 1
        %s281 = scalar_lea.sflag [#allocation6], %s280
        %s282 = sand.u32 %s99, 1
        %s283 = smul.addr %s282, 16
        %s284 = scalar_lea.vmem [#allocation5], %s283
        // Predicated region
        $region37: #{tpu_custom_call.1} parent=35 // pred_check
          %p285 = pneg %p112
        $region38: #{tpu_custom_call.1} parent=35 // pred_check_branch
          %287 = sbr.rel (%p285) target = $region40
        $region39: #{tpu_custom_call.1} parent=35 // pred_region
          %289 = dma.done %s281, 256
        $region40: #{tpu_custom_call.1} parent=35 // pred_fallthru
          _
        %p290 = scmp.lt.s32.totalorder %s28, 3
        %s291 = scalar_select %p290, %s28, 3
        %s292 = smul.addr %s291, 4
        %s293 = scalar_lea.vmem %s0, %s292
        %p294 = pneg %p68
        %p295 = pneg %p65
        %s296 = sand.u32 %s99, 1
        %s297 = scalar_lea.sflag [#allocation6], %s296
        %s298 = sand.u32 %s99, 1
        %s299 = smul.addr %s298, 16
        %s300 = scalar_lea.vmem [#allocation5], %s299
        %p301 = pneg %p112
        %p302 = pneg %p109
        %p303 = scmp.lt.s32.totalorder %s29, 1
        %s304 = scalar_select %p303, %s29, 1
        %s305 = smul.addr %s304, 8
        %s306 = scalar_lea.vmem %s2, %s305
        %p307 = pneg %p138
        %p308 = pneg %p135
        %p309 = scmp.lt.s32.totalorder %s29, 1
        %s310 = scalar_select %p309, %s29, 1
        %s311 = smul.addr %s310, 8
        %s312 = scalar_lea.vmem %s3, %s311
        %p313 = pneg %p164
        %p314 = pneg %p161
        %p315 = pneg %p200
        %p316 = pneg %p197
        %s317 = sand.u32 %s187, 1
        %s318 = scalar_lea.sflag [#allocation7], %s317
        %s319 = sand.u32 %s187, 1
        %s320 = smul.addr %s319, 16
        %s321 = scalar_lea.vmem [#allocation8], %s320
        %p322 = scmp.lt.s32.totalorder %s28, 3
        %s323 = scalar_select %p322, %s28, 3
        %s324 = smul.addr %s323, 4
        %s325 = scalar_lea.vmem %s0, %s324
        %s326 = ssub.s32 1, %s27
        %s327 = smul.u32 %s28, %s326
        %s328 = smul.u32 %s27, 3
        %s329 = sadd.s32 %s327, %s328
        %s330 = smul.u32 %s29, %s326
        %s331 = sadd.s32 %s330, %s27
        %s332 = smul.u32 %s30, %s326
        %s333 = smul.u32 2, %s332
        %p334 = scmp.lt.s32.totalorder %s29, 1
        %s335 = scalar_select %p334, %s29, 1
        %s336 = smul.addr %s335, 8
        %s337 = scalar_lea.vmem %s2, %s336
        %p338 = scmp.lt.s32.totalorder %s29, 1
        %s339 = scalar_select %p338, %s29, 1
        %s340 = smul.addr %s339, 8
        %s341 = scalar_lea.vmem %s3, %s340
        %s342 = smul.u32 %s28, %s27
        %s343 = smul.u32 %s29, %s27
        %s344 = smul.u32 %s30, %s27
        %s345 = smul.u32 2, %s344
        %p347 = scmp.eq.s32.totalorder %s28, 0
        %p348 = scmp.eq.s32.totalorder %s29, 0
        %p349 = pnand %p347, %p348
        %p350 = pneg %p349
        %p351 = scmp.eq.s32.totalorder %s30, 0
        %p352 = pnand %p350, %p351
        %p353 = pneg %p352
        %s354 = smul.u32 %s28, 2
        %s355 = sadd.s32 %s354, %s29
        %s356 = sadd.s32 %s355, %s30
        %p357 = scmp.eq.s32.totalorder %s27, 0
        // Predicated region
        $region41: #{tpu_custom_call.1} parent=35 // pred_check
          %p358 = pneg %p357
        $region42: #{tpu_custom_call.1} parent=35 // pred_check_branch
          %360 = sbr.rel (%p358) target = $region44
        $region43: #{tpu_custom_call.1} parent=35 // pred_region
          // Predicated region
          $region45: #{tpu_custom_call.1} parent=43 // pred_check
            _
          $region46: #{tpu_custom_call.1} parent=43 // pred_check_branch
            %362 = sbr.rel (%p352) target = $region48
          $region47: #{tpu_custom_call.1} parent=43 // pred_region
            %vm363 = vcmask 7168
            %364 = vst.msk [vmem:[#allocation2] sm:$0xff] %vm363, 0.0
            %365 = vst.msk [vmem:[#allocation3] sm:$0xff] %vm363, 0.0
          $region48: #{tpu_custom_call.1} parent=43 // pred_fallthru
            _
          %v366 = vld [vmem:[%s325] sm:$0xf]
          %v367 = vld [vmem:[%s284] sm:$0xff]
          %v368 = vld [vmem:[%s284 + $0x8] sm:$0xff]
          %v371 = vunpack.c.l.b16 %v367
          %v372 = vunpack.c.h.b16 %v367
          %v373 = vunpack.c.l.b16 %v368
          %v374 = vunpack.c.h.b16 %v368
          %v375 = vpack.c.b16 %v373, %v371
          %v376 = vpack.c.b16 %v374, %v372
          %vm379 = vcmask 130048
          %v381 = vsel %vm379, %v366, 0
          %383 = vmatpush.bf16.msra.mxu0 0
          %384 = vmatpush.bf16.msra.mxu0 0
          %385 = vmatpush.bf16.msra.mxu0 0
          %386 = vmatpush.bf16.msra.mxu0 0
          %387 = vmatpush.bf16.msra.mxu0 0
          %388 = vmatpush.bf16.msra.mxu0 0
          %389 = vmatpush.bf16.msra.mxu0 0
          %390 = vmatpush.bf16.msra.mxu0 %v375
          %391 = vmatmul.bf16.gmra.mxu0 %v381
          %v392 = vpop.f32.mrf.mxu0
          %v393 = vadd.f32 0.0, %v392
          %v394 = vpop.f32.mrf.mxu0
          %395 = vdwg.mxu0
          %396 = vmatpush.bf16.msra.mxu0 0
          %397 = vmatpush.bf16.msra.mxu0 0
          %398 = vmatpush.bf16.msra.mxu0 0
          %399 = vmatpush.bf16.msra.mxu0 0
          %400 = vmatpush.bf16.msra.mxu0 0
          %401 = vmatpush.bf16.msra.mxu0 0
          %402 = vmatpush.bf16.msra.mxu0 0
          %403 = vmatpush.bf16.msra.mxu0 %v376
          %404 = vmatmul.bf16.gmra.mxu0 %v381
          %v405 = vpop.f32.mrf.mxu0
          %v406 = vadd.f32 0.0, %v405
          %v407 = vpop.f32.mrf.mxu0
          %408 = vdwg.mxu0
          %s409 = smul.u32 %s356, 2
          %s410 = smul.addr %s409, 8
          %s411 = scalar_lea.vmem [#allocation4], %s410
          %412 = vst [vmem:[%s411] sm:$0xff] %v393
          %413 = vst [vmem:[%s411 + $0x8] sm:$0xff] %v406
          %v414 = vld [vmem:[#allocation2] sm:$0xff]
          %v415 = vadd.f32 %v393, %v406
          %416 = vadd.xlane.f32.xlu0 %v415
          %v417 = vpop.xlane.xlu0 %416
          %v418 = vadd.f32 %v414, %v417
          %vm419 = vcmask 7168
          %420 = vst.msk [vmem:[#allocation2] sm:$0xff] %vm419, %v418
          %v421 = vld [vmem:[#allocation3] sm:$0xff]
          %v422 = vmul.f32 %v393, %v393
          %v423 = vmul.f32 %v406, %v406
          %v424 = vadd.f32 %v422, %v423
          %425 = vadd.xlane.f32.xlu0 %v424
          %v426 = vpop.xlane.xlu0 %425
          %v427 = vadd.f32 %v421, %v426
          %428 = vst.msk [vmem:[#allocation3] sm:$0xff] %vm419, %v427
        $region44: #{tpu_custom_call.1} parent=35 // pred_fallthru
          _
        %p429 = scmp.eq.s32.totalorder %s27, 1
        // Predicated region
        $region49: #{tpu_custom_call.1} parent=35 // pred_check
          %p430 = pneg %p429
        $region50: #{tpu_custom_call.1} parent=35 // pred_check_branch
          %432 = sbr.rel (%p430) target = $region52
        $region51: #{tpu_custom_call.1} parent=35 // pred_region
          // Predicated region
          $region53: #{tpu_custom_call.1} parent=51 // pred_check
            _
          $region54: #{tpu_custom_call.1} parent=51 // pred_check_branch
            %434 = sbr.rel (%p352) target = $region56
          $region55: #{tpu_custom_call.1} parent=51 // pred_region
            %v435 = vld [vmem:[#allocation2] sm:$0xff]
            %v436 = vmul.f32 %v435, 0.00048828125
            %v437 = vld [vmem:[#allocation3] sm:$0xff]
            %v438 = vmul.f32 %v437, 0.00048828125
            %v439 = vmul.f32 %v436, %v436
            %v440 = vsub.f32 %v438, %v439
            %vm441 = vcmask 7168
            %442 = vst.msk [vmem:[#allocation2] sm:$0xff] %vm441, %v436
            %v443 = vadd.f32 %v440, 1e-05
            %v444 = vrsqrt.pop %v443
            %v445 = vmul.f32 %v444, %v443
            %v446 = vmul.f32 %v445, %v444
            %v447 = vmul.f32 0.5, %v446
            %v448 = vsub.f32 1.5, %v447
            %v449 = vmul.f32 %v444, %v448
            %vm450 = vweird.f32 %v443
            %vm451 = vweird.f32 %v444
            %vm452 = vmor %vm450, %vm451
            %v453 = vsel %vm452, %v444, %v449
            %454 = vst.msk [vmem:[#allocation3] sm:$0xff] %vm441, %v453
          $region56: #{tpu_custom_call.1} parent=51 // pred_fallthru
            _
          %s455 = smul.u32 %s356, 2
          %s456 = smul.addr %s455, 8
          %s457 = scalar_lea.vmem [#allocation4], %s456
          %v458 = vld [vmem:[%s457] sm:$0xff]
          %v459 = vld [vmem:[%s457 + $0x8] sm:$0xff]
          %v460 = vld [vmem:[%s337] sm:$0xff]
          %v461 = vld [vmem:[#allocation3] sm:$0xff]
          %v462 = vmul.f32 %v460, %v461
          %v463 = vld [vmem:[%s341] sm:$0xff]
          %v464 = vld [vmem:[#allocation2] sm:$0xff]
          %v465 = vmul.f32 %v462, %v464
          %v466 = vsub.f32 %v463, %v465
          %468 = vset.pattern.permute.xlu0 0
          %469 = vperm.xlu0 %468, %v462
          %v470 = vpop.permute.xlu0 %469
          %v472 = vmul.f32 %v470, %v458
          %v473 = vmul.f32 %v470, %v459
          %475 = vset.pattern.permute.xlu0 0
          %476 = vperm.xlu0 %475, %v466
          %v477 = vpop.permute.xlu0 %476
          %v479 = vadd.f32 %v472, %v477
          %v480 = vadd.f32 %v473, %v477
          %v481 = vmul.f32 %v479, 0.2
          %v482 = vmul.f32 %v480, 0.2
          %v483 = vmax.f32 %v479, %v481
          %v484 = vmax.f32 %v480, %v482
          %485 = vst [vmem:[%s321] sm:$0xff] %v483
          %486 = vst [vmem:[%s321 + $0x8] sm:$0xff] %v484
        $region52: #{tpu_custom_call.1} parent=35 // pred_fallthru
          _
        %s487 = sand.u32 %s187, 1
        %s488 = scalar_lea.sflag [#allocation7], %s487
        %s489 = sand.u32 %s187, 1
        %s490 = smul.addr %s489, 16
        %s491 = scalar_lea.vmem [#allocation8], %s490
        // Predicated region
        $region57: #{tpu_custom_call.1} parent=35 // pred_check
          %p492 = pneg %p197
        $region58: #{tpu_custom_call.1} parent=35 // pred_check_branch
          %494 = sbr.rel (%p492) target = $region60
        $region59: #{tpu_custom_call.1} parent=35 // pred_region
          %s495 = smul.u32 %s28, %s27
          %s496 = smul.u32 %s29, %s27
          %s497 = smul.u32 %s30, %s27
          %s498 = smul.u32 2, %s497
          %500 = vsyncadd %s488, 0
          %s501 = smul.addr %s496, 2
          %s502 = sadd.s32 %s498, %s501
          %s503 = smul.addr %s495, 4
          %s504 = sadd.s32 %s502, %s503
          %s505 = smul.addr %s504, 8
          %s506 = scalar_lea.hbm %s4, %s505
          %s508 = sshll.u32 %s491, 4
          %s509 = int_to_ptr.vmem [resolvable:$true] %s508
          %s510 = sshll.u32 %s506, 4
          %s511 = int_to_ptr.hbm [resolvable:$true] %s510
          %513 = dma.vmem_to_hbm [thread:$0]  %s509, 256, %s511, %s488
        $region60: #{tpu_custom_call.1} parent=35 // pred_fallthru
          _
      $region36: #{tpu_custom_call.1} parent=5 // pred_fallthru
        _
      %p514 = scmp.le.s32.totalorder 2, %s16
      // Predicated region
      $region61: #{tpu_custom_call.1} parent=5 // pred_check
        %p515 = pneg %p514
      $region62: #{tpu_custom_call.1} parent=5 // pred_check_branch
        %517 = sbr.rel (%p515) target = $region64
      $region63: #{tpu_custom_call.1} parent=5 // pred_region
        %s518 = ssub.s32 %s16, 2
        // Predicated region
        $region65: #{tpu_custom_call.1} parent=63 // pred_check
          %p519 = pneg %p203
        $region66: #{tpu_custom_call.1} parent=63 // pred_check_branch
          %521 = sbr.rel (%p519) target = $region68
        $region67: #{tpu_custom_call.1} parent=63 // pred_region
          %s522 = sand.u32 %s188, 1
          %s523 = scalar_lea.sflag [#allocation7], %s522
          %s524 = sand.u32 %s188, 1
          %s525 = smul.addr %s524, 16
          %s526 = scalar_lea.vmem [#allocation8], %s525
          %528 = dma.done %s523, 256
        $region68: #{tpu_custom_call.1} parent=63 // pred_fallthru
          _
      $region64: #{tpu_custom_call.1} parent=5 // pred_fallthru
        _
    $region6: #{tpu_custom_call.1} parent=1 // loop_footer
      %s20 = sadd.s32 1, %s16
    $region7: #{tpu_custom_call.1} parent=1 // loop_footer_branch
      %15 = sbr.rel target = $region3
    $region8: #{tpu_custom_call.1} parent=1 // loop_exit
      _
    %529 = vsyncpa [#allocation6], 1
    %s530 = scalar_lea.sflag [#allocation6], 1
    %531 = vsyncpa %s530, 1
    %532 = vsyncpa [#allocation7], 1
    %s533 = scalar_lea.sflag [#allocation7], 1
    %534 = vsyncpa %s533, 1

</llo_original>
